<compile_context>
chip_gen: v5e
topology: v5e:2x2
jax: 0.10.0
libtpu: 0.0.40
codegen_flags: <defaults>
</compile_context>

<pallas_src>
import jax
import jax.numpy as jnp
from jax.experimental import pallas as pl
from jax.experimental.pallas import tpu as pltpu


def _round_up(x, m):
    return ((x + m - 1) // m) * m


def _head_kernel(x_ref, w1_ref, b1_ref, w2_ref, b2_ref, o_ref):
    # In-kernel cast of the streamed activations to bf16 (VPU work hidden under
    # the MXU); avoids a whole extra HBM pass in the wrapper.
    x = x_ref[...].astype(jnp.bfloat16)
    # dense: (TB, D) bf16 @ (D, H) bf16 -> f32 accumulate on the MXU.
    h = jnp.dot(x, w1_ref[...], preferred_element_type=jnp.float32)
    # Fold the f32 bias, cast once, run tanh in bf16 (bf16 EUP path on v6e/v7x).
    h = jnp.tanh((h + b1_ref[...]).astype(jnp.bfloat16))
    # out_proj: (TB, H) bf16 @ (H, Cpad) bf16 -> f32, lane-dense output slab.
    out = jnp.dot(h, w2_ref[...], preferred_element_type=jnp.float32)
    o_ref[...] = (out + b2_ref[...]).astype(o_ref.dtype)


def prepare_head_params(w1_t, b1, w2_t, b2):
    """One-time parameter preprocessing (hoisted out of the per-call hot path).

    w1_t: (D, H), b1: (H,), w2_t: (H, C), b2: (C,)  -- weights pre-transposed.
    Returns (w1_bf16, b1_2d_f32, w2_bf16_padded, b2_2d_f32_padded, num_classes).
    """
    H, C = w2_t.shape
    c_pad = _round_up(max(C, 128), 128)

    w1 = w1_t.astype(jnp.bfloat16)
    if c_pad == C:
        w2 = w2_t.astype(jnp.bfloat16)
        b2_2d = b2.astype(jnp.float32).reshape(1, c_pad)
    else:
        # Zero-pad the class lanes to a full 128-lane slab (sliced off later).
        w2 = jnp.zeros((H, c_pad), jnp.bfloat16).at[:, :C].set(
            w2_t.astype(jnp.bfloat16))
        b2_2d = jnp.zeros((1, c_pad), jnp.float32).at[0, :C].set(
            b2.astype(jnp.float32))
    b1_2d = b1.astype(jnp.float32).reshape(1, H)
    return (w1, b1_2d, w2, b2_2d, C)


def _choose_batch_tiling(batch, block_b):
    """Pick (tile_rows, num_tiles) for the batch grid."""
    if batch <= 8:
        # Full-dim block (allowed even when not a multiple of 8).
        return batch, 1
    num_tiles = pl.cdiv(batch, block_b)
    if batch >= 16:
        # v7x megacore: at least 2 (and an even number of) grid steps so the
        # "parallel" batch axis can shard evenly across both TensorCores.
        num_tiles = _round_up(max(num_tiles, 2), 2)
    tb = _round_up(pl.cdiv(batch, num_tiles), 8)
    # Actual grid; the (possibly partial) edge block is masked by Pallas.
    num_tiles = pl.cdiv(batch, tb)
    return tb, num_tiles


def bart_classification_head_apply(features, prepared_params, *, block_b=1024):
    """features: (B, D) in its native dtype; prepared_params from prepare_head_params."""
    w1, b1_2d, w2, b2_2d, num_classes = prepared_params
    B, D = features.shape
    H = w1.shape[1]
    c_pad = w2.shape[1]
    out_dtype = features.dtype

    tb, num_tiles = _choose_batch_tiling(B, block_b)

    # VMEM budget: double-buffered x / out streams, (conservatively) double-
    # buffered bf16 weights + biases, plus the f32 pre-activation and bf16 h.
    # Raised above v5e's 16 MiB scoped default, capped at 48 MiB so we never
    # ask for the entirety of a v7x TensorCore's 64 MiB.
    x_bytes = jnp.dtype(features.dtype).itemsize
    out_bytes = jnp.dtype(out_dtype).itemsize
    vmem_bytes = (2 * tb * D * x_bytes            # x tiles (native dtype)
                  + 2 * (D * H + H * c_pad) * 2   # bf16 w1 / w2
                  + 2 * (H + c_pad) * 4           # f32 biases
                  + 2 * tb * c_pad * out_bytes    # output slabs
                  + tb * H * (4 + 2))             # f32 pre-act + bf16 h
    vmem_limit = int(min(max(2 * vmem_bytes, 32 * 1024 * 1024),
                         48 * 1024 * 1024))

    out = pl.pallas_call(
        _head_kernel,
        out_shape=jax.ShapeDtypeStruct((B, c_pad), out_dtype),
        grid_spec=pltpu.PrefetchScalarGridSpec(
            num_scalar_prefetch=0,
            grid=(num_tiles,),
            in_specs=[
                pl.BlockSpec((tb, D), lambda i: (i, 0)),      # x: streamed per tile
                pl.BlockSpec((D, H), lambda i: (0, 0)),       # w1: VMEM-resident
                pl.BlockSpec((1, H), lambda i: (0, 0)),       # b1: VMEM-resident
                pl.BlockSpec((H, c_pad), lambda i: (0, 0)),   # w2: VMEM-resident
                pl.BlockSpec((1, c_pad), lambda i: (0, 0)),   # b2: VMEM-resident
            ],
            out_specs=pl.BlockSpec((tb, c_pad), lambda i: (i, 0)),
        ),
        compiler_params=pltpu.CompilerParams(
            dimension_semantics=("parallel",),   # shard batch tiles across TCs
            vmem_limit_bytes=vmem_limit,
        ),
    )(features, w1, b1_2d, w2, b2_2d)

    # Drop the zero-padded class lanes.
    return out[:, :num_classes]


def bart_classification_head(features, w1_t, b1, w2_t, b2, *, block_b=1024):
    """Convenience wrapper: prepares parameters and applies the head.

    For serving, call prepare_head_params() once and reuse the result with
    bart_classification_head_apply() to avoid re-casting/padding weights per call.
    """
    params = prepare_head_params(w1_t, b1, w2_t, b2)
    return bart_classification_head_apply(features, params, block_b=block_b)


def _reference(features, w1_t, b1, w2_t, b2):
    # Reference with the same precision choices as the kernel: bf16 operands,
    # f32 accumulation, bf16 tanh (a deliberate precision tradeoff vs f32).
    x = features.astype(jnp.bfloat16)
    w1 = w1_t.astype(jnp.bfloat16)
    w2 = w2_t.astype(jnp.bfloat16)
    pre = jnp.dot(x, w1, preferred_element_type=jnp.float32) + b1.astype(jnp.float32)
    h = jnp.tanh(pre.astype(jnp.bfloat16))
    return jnp.dot(h, w2, preferred_element_type=jnp.float32) + b2.astype(jnp.float32)


if __name__ == "__main__":
    # Small, module-consistent shapes.
    batch = 8
    input_dim = 32     # input_dim
    inner_dim = 64     # inner_dim
    num_classes = 4    # num_classes

    key = jax.random.PRNGKey(0)
    k_x, k_w1, k_b1, k_w2, k_b2 = jax.random.split(key, 5)

    features = jax.random.normal(k_x, (batch, input_dim), dtype=jnp.float32)

    # Deterministic synthetic parameters (PyTorch-Linear-like uniform init),
    # stored pre-transposed: (D, H) and (H, C).
    lim1 = 1.0 / (input_dim ** 0.5)
    lim2 = 1.0 / (inner_dim ** 0.5)
    w1_t = jax.random.uniform(k_w1, (input_dim, inner_dim),
                              minval=-lim1, maxval=lim1, dtype=jnp.float32)
    b1 = jax.random.uniform(k_b1, (inner_dim,),
                            minval=-lim1, maxval=lim1, dtype=jnp.float32)
    w2_t = jax.random.uniform(k_w2, (inner_dim, num_classes),
                              minval=-lim2, maxval=lim2, dtype=jnp.float32)
    b2 = jax.random.uniform(k_b2, (num_classes,),
                            minval=-lim2, maxval=lim2, dtype=jnp.float32)

    # Prepare-once / apply pattern (weight preprocessing hoisted off the hot path).
    params = prepare_head_params(w1_t, b1, w2_t, b2)
    out = bart_classification_head_apply(features, params)
    out = jax.block_until_ready(out)

    ref = _reference(features, w1_t, b1, w2_t, b2)
    assert out.shape == (batch, num_classes)
    assert jnp.allclose(out, ref, atol=1e-2, rtol=1e-2), "mismatch vs reference"

    print("KERNEL_OK")
</pallas_src>

<mosaic_0001>
module attributes {stable_mosaic.version = 11 : i64} {
  func.func @_head_kernel(%arg0: i32, %arg1: memref<8x32xf32, #tpu.memory_space<vmem>>, %arg2: memref<32x64xbf16, #tpu.memory_space<vmem>>, %arg3: memref<1x64xf32, #tpu.memory_space<vmem>>, %arg4: memref<64x128xbf16, #tpu.memory_space<vmem>>, %arg5: memref<1x128xf32, #tpu.memory_space<vmem>>, %arg6: memref<8x128xf32, #tpu.memory_space<vmem>>) attributes {dimension_semantics = [#tpu.dimension_semantics<parallel>], iteration_bounds = array<i64: 1>, scalar_prefetch = 0 : i64, scratch_operands = 0 : i64, tpu.core_type = #tpu.core_type<tc>, window_params = [{transform_indices = @transform_0, window_bounds = array<i64: 8, 32>}, {pipeline_mode = #tpu.pipeline_mode<synchronous>, transform_indices = @transform_1, window_bounds = array<i64: 32, 64>}, {pipeline_mode = #tpu.pipeline_mode<synchronous>, transform_indices = @transform_2, window_bounds = array<i64: 1, 64>}, {pipeline_mode = #tpu.pipeline_mode<synchronous>, transform_indices = @transform_3, window_bounds = array<i64: 64, 128>}, {pipeline_mode = #tpu.pipeline_mode<synchronous>, transform_indices = @transform_4, window_bounds = array<i64: 1, 128>}, {transform_indices = @transform_5, window_bounds = array<i64: 8, 128>}]} {
    %c0 = arith.constant 0 : index
    %c0_0 = arith.constant 0 : index
    %0 = vector.load %arg1[%c0, %c0_0] : memref<8x32xf32, #tpu.memory_space<vmem>>, vector<8x32xf32>
    %1 = arith.truncf %0 : vector<8x32xf32> to vector<8x32xbf16>
    %c0_1 = arith.constant 0 : index
    %c0_2 = arith.constant 0 : index
    %2 = vector.load %arg2[%c0_1, %c0_2] : memref<32x64xbf16, #tpu.memory_space<vmem>>, vector<32x64xbf16>
    %cst = arith.constant dense<0.000000e+00> : vector<8x64xf32>
    %3 = tpu.matmul %1, %2, %cst {dimension_numbers = #tpu.dot_dimension_numbers<[1], [0], [0], [1], [0, 0, 1, 1], [], []>} : vector<8x32xbf16>, vector<32x64xbf16>, vector<8x64xf32> -> vector<8x64xf32>
    %c0_3 = arith.constant 0 : index
    %c0_4 = arith.constant 0 : index
    %4 = vector.load %arg3[%c0_3, %c0_4] : memref<1x64xf32, #tpu.memory_space<vmem>>, vector<1x64xf32>
    %5 = vector.broadcast %4 : vector<1x64xf32> to vector<8x64xf32>
    %6 = arith.addf %3, %5 : vector<8x64xf32>
    %7 = arith.truncf %6 : vector<8x64xf32> to vector<8x64xbf16>
    %8 = math.tanh %7 : vector<8x64xbf16>
    %c0_5 = arith.constant 0 : index
    %c0_6 = arith.constant 0 : index
    %9 = vector.load %arg4[%c0_5, %c0_6] : memref<64x128xbf16, #tpu.memory_space<vmem>>, vector<64x128xbf16>
    %cst_7 = arith.constant dense<0.000000e+00> : vector<8x128xf32>
    %10 = tpu.matmul %8, %9, %cst_7 {dimension_numbers = #tpu.dot_dimension_numbers<[1], [0], [0], [1], [0, 0, 1, 1], [], []>} : vector<8x64xbf16>, vector<64x128xbf16>, vector<8x128xf32> -> vector<8x128xf32>
    %c0_8 = arith.constant 0 : index
    %c0_9 = arith.constant 0 : index
    %11 = vector.load %arg5[%c0_8, %c0_9] : memref<1x128xf32, #tpu.memory_space<vmem>>, vector<1x128xf32>
    %12 = vector.broadcast %11 : vector<1x128xf32> to vector<8x128xf32>
    %13 = arith.addf %10, %12 : vector<8x128xf32>
    %c0_10 = arith.constant 0 : index
    %c0_11 = arith.constant 0 : index
    %14 = vector.load %arg6[%c0_10, %c0_11] : memref<8x128xf32, #tpu.memory_space<vmem>>, vector<8x128xf32>
    tpu.vector_store %arg6[%c0_10, %c0_11], %13 {strides = array<i32>} : memref<8x128xf32, #tpu.memory_space<vmem>>, vector<8x128xf32>,
    return
  }
  func.func @transform_0(%arg0: i32) -> (i32, i32) {
    %c0_i32 = arith.constant 0 : i32
    %c0_i32_0 = arith.constant 0 : i32
    return %arg0, %c0_i32 : i32, i32
  }
  func.func @transform_1(%arg0: i32) -> (i32, i32) {
    %c0_i32 = arith.constant 0 : i32
    %c0_i32_0 = arith.constant 0 : i32
    %c0_i32_1 = arith.constant 0 : i32
    return %c0_i32, %c0_i32_0 : i32, i32
  }
  func.func @transform_2(%arg0: i32) -> (i32, i32) {
    %c0_i32 = arith.constant 0 : i32
    %c0_i32_0 = arith.constant 0 : i32
    %c0_i32_1 = arith.constant 0 : i32
    return %c0_i32, %c0_i32_0 : i32, i32
  }
  func.func @transform_3(%arg0: i32) -> (i32, i32) {
    %c0_i32 = arith.constant 0 : i32
    %c0_i32_0 = arith.constant 0 : i32
    %c0_i32_1 = arith.constant 0 : i32
    return %c0_i32, %c0_i32_0 : i32, i32
  }
  func.func @transform_4(%arg0: i32) -> (i32, i32) {
    %c0_i32 = arith.constant 0 : i32
    %c0_i32_0 = arith.constant 0 : i32
    %c0_i32_1 = arith.constant 0 : i32
    return %c0_i32, %c0_i32_0 : i32, i32
  }
  func.func @transform_5(%arg0: i32) -> (i32, i32) {
    %c0_i32 = arith.constant 0 : i32
    %c0_i32_0 = arith.constant 0 : i32
    return %arg0, %c0_i32 : i32, i32
  }
}

</mosaic_0001>

<llo_original>
// kernel: tpu_custom_call.1
$region0: #{tpu_custom_call.1}
  #allocation0 [shape = 'u32[]', space=smem, size = 0x4, offset = 0x4, fixed_abs, tag = 'smem constant byte address 0x4 - core index']
  #allocation1 [shape = 'u32[72,128]{1,0:T(1,128)}', space=vmem, size = 0x9000, scoped, tag = 'internal scratch']
  %s0 = inlined_call_operand.hbm [shape: f32[8,32], index: 0, kind: input, shape index: {}]
  %s1 = inlined_call_operand.hbm [shape: bf16[32,64], index: 1, kind: input, shape index: {}]
  %s2 = inlined_call_operand.vmem [shape: f32[1,64], index: 2, kind: input, shape index: {}]
  %s3 = inlined_call_operand.hbm [shape: bf16[64,128], index: 3, kind: input, shape index: {}]
  %s4 = inlined_call_operand.vmem [shape: f32[1,128], index: 4, kind: input, shape index: {}]
  %s5 = inlined_call_operand.hbm [shape: f32[8,128], index: 5, kind: output, shape index: {}]
  %s6 = sld [smem:[#allocation0]]
  $region42: #{tpu_custom_call.1} parent=0
    _
  %s8 = ssub.s32 1, %s6
  %s9 = scalar_select 0, %s8, %s6
  $region1: #{tpu_custom_call.1} parent=0
    #allocation2 [shape = 'u8[4096]{0}', space=vmem, size = 0x1000, scoped, tag = 'input window, operand 0, single buffered']
    #allocation3 [shape = 's32[1]{0}', space=sflag, size = 0x4, scoped, tag = 'scoped memory for tpu_custom_call.1']
    #allocation4 [shape = 's32[1]{0}', space=sflag, size = 0x4, scoped, tag = 'scoped memory for tpu_custom_call.1']
    #allocation5 [shape = 'u8[8192]{0}', space=vmem, size = 0x2000, scoped, tag = 'input window, operand 1, single buffered']
    #allocation6 [shape = 's32[1]{0}', space=sflag, size = 0x4, scoped, tag = 'scoped memory for tpu_custom_call.1']
    #allocation7 [shape = 'u8[16384]{0}', space=vmem, size = 0x4000, scoped, tag = 'input window, operand 3, single buffered']
    #allocation8 [shape = 'u8[4096]{0}', space=vmem, size = 0x1000, scoped, tag = 'output window, operand 0, single buffered']
    %10 = vsyncpa [#allocation3], 0
    %11 = vsyncpa [#allocation6], 0
    %12 = vsyncpa [#allocation4], 0
    // Predicated region
    $region2: #{tpu_custom_call.1} parent=1 // pred_check
      _
    $region3: #{tpu_custom_call.1} parent=1 // pred_check_branch
      %14 = sbr.rel (0) target = $region5
    $region4: #{tpu_custom_call.1} parent=1 // pred_region
      %16 = vsyncadd [#allocation3], 0
      %s18 = sshll.u32 %s0, 4
      %s19 = int_to_ptr.hbm [resolvable:$true] %s18
      %s20 = sshll.u32 [#allocation2], 4
      %s21 = int_to_ptr.vmem [resolvable:$true] %s20
      %23 = dma.hbm_to_vmem [thread:$0]  %s19, 128, %s21, [#allocation3]
    $region5: #{tpu_custom_call.1} parent=1 // pred_fallthru
      _
    // Predicated region
    $region6: #{tpu_custom_call.1} parent=1 // pred_check
      _
    $region7: #{tpu_custom_call.1} parent=1 // pred_check_branch
      %25 = sbr.rel (0) target = $region9
    $region8: #{tpu_custom_call.1} parent=1 // pred_region
      %27 = vsyncadd [#allocation6], 0
      %s28 = sshll.u32 %s1, 4
      %s29 = int_to_ptr.hbm [resolvable:$true] %s28
      %s30 = sshll.u32 [#allocation5], 4
      %s31 = int_to_ptr.vmem [resolvable:$true] %s30
      %36 = dma.hbm_to_vmem [thread:$0]  %s29, 256, %s31, [#allocation6], 64, 64, 4
    $region9: #{tpu_custom_call.1} parent=1 // pred_fallthru
      _
    // Predicated region
    $region10: #{tpu_custom_call.1} parent=1 // pred_check
      _
    $region11: #{tpu_custom_call.1} parent=1 // pred_check_branch
      %38 = sbr.rel (0) target = $region13
    $region12: #{tpu_custom_call.1} parent=1 // pred_region
      _
    $region13: #{tpu_custom_call.1} parent=1 // pred_fallthru
      _
    // Predicated region
    $region14: #{tpu_custom_call.1} parent=1 // pred_check
      _
    $region15: #{tpu_custom_call.1} parent=1 // pred_check_branch
      %40 = sbr.rel (0) target = $region17
    $region16: #{tpu_custom_call.1} parent=1 // pred_region
      %42 = vsyncadd [#allocation6], 0
      %s43 = sshll.u32 %s3, 4
      %s44 = int_to_ptr.hbm [resolvable:$true] %s43
      %s45 = sshll.u32 [#allocation7], 4
      %s46 = int_to_ptr.vmem [resolvable:$true] %s45
      %51 = dma.hbm_to_vmem [thread:$0]  %s44, 512, %s46, [#allocation6], 64, 64, 4
    $region17: #{tpu_custom_call.1} parent=1 // pred_fallthru
      _
    // Predicated region
    $region18: #{tpu_custom_call.1} parent=1 // pred_check
      _
    $region19: #{tpu_custom_call.1} parent=1 // pred_check_branch
      %53 = sbr.rel (0) target = $region21
    $region20: #{tpu_custom_call.1} parent=1 // pred_region
      _
    $region21: #{tpu_custom_call.1} parent=1 // pred_fallthru
      _
    // Predicated region
    $region22: #{tpu_custom_call.1} parent=1 // pred_check
      _
    $region23: #{tpu_custom_call.1} parent=1 // pred_check_branch
      %55 = sbr.rel (0) target = $region25
    $region24: #{tpu_custom_call.1} parent=1 // pred_region
      %57 = dma.done [#allocation3], 128
    $region25: #{tpu_custom_call.1} parent=1 // pred_fallthru
      _
    // Predicated region
    $region26: #{tpu_custom_call.1} parent=1 // pred_check
      _
    $region27: #{tpu_custom_call.1} parent=1 // pred_check_branch
      %59 = sbr.rel (0) target = $region29
    $region28: #{tpu_custom_call.1} parent=1 // pred_region
      %61 = dma.done [#allocation6], 256
    $region29: #{tpu_custom_call.1} parent=1 // pred_fallthru
      _
    // Predicated region
    $region30: #{tpu_custom_call.1} parent=1 // pred_check
      _
    $region31: #{tpu_custom_call.1} parent=1 // pred_check_branch
      %63 = sbr.rel (0) target = $region33
    $region32: #{tpu_custom_call.1} parent=1 // pred_region
      %65 = dma.done [#allocation6], 512
    $region33: #{tpu_custom_call.1} parent=1 // pred_fallthru
      _
    %v67 = vld [vmem:[#allocation2] sm:$0xff]
    %v68 = vpack.c.bf16 %v67, %v67
    %v69 = vld [vmem:[#allocation5] sm:$0xf]
    %v70 = vld [vmem:[#allocation5 + $0x4] sm:$0xf]
    %v71 = vld [vmem:[#allocation5 + $0x8] sm:$0xf]
    %v72 = vld [vmem:[#allocation5 + $0xc] sm:$0xf]
    %v73 = vld [vmem:[%s2] sm:$0x1]
    %v75 = vperm.slane %v73, 0
    %v81 = vunpack.c.l.b16 %v69
    %v82 = vunpack.c.l.b16 %v70
    %v83 = vunpack.c.l.b16 %v71
    %v84 = vunpack.c.l.b16 %v72
    %v85 = vpack.c.b16 %v82, %v81
    %v86 = vpack.c.b16 %v84, %v83
    %vm89 = vcmask 261120
    %v91 = vsel %vm89, %v68, 0
    %93 = vmatpush.bf16.msra.mxu0 0
    %94 = vmatpush.bf16.msra.mxu0 0
    %95 = vmatpush.bf16.msra.mxu0 0
    %96 = vmatpush.bf16.msra.mxu0 0
    %97 = vmatpush.bf16.msra.mxu0 0
    %98 = vmatpush.bf16.msra.mxu0 0
    %99 = vmatpush.bf16.msra.mxu0 %v86
    %100 = vmatpush.bf16.msra.mxu0 %v85
    %101 = vmatmul.bf16.gmra.mxu0 %v91
    %v102 = vpop.f32.mrf.mxu0
    %v103 = vadd.f32 %v75, %v102
    %v104 = vpop.f32.mrf.mxu0
    %105 = vdwg.mxu0
    %v106 = vpack.c.bf16 %v103, %v103
    %v107 = vunpack.c.l.bf16 %v106
    %v108 = vtanh.pop %v107
    %v109 = vpack.c.bf16 %v108, %v108
    %v110 = vld [vmem:[#allocation7] sm:$0xf]
    %v111 = vld [vmem:[#allocation7 + $0x4] sm:$0xf]
    %v112 = vld [vmem:[#allocation7 + $0x8] sm:$0xf]
    %v113 = vld [vmem:[#allocation7 + $0xc] sm:$0xf]
    %v114 = vld [vmem:[#allocation7 + $0x10] sm:$0xf]
    %v115 = vld [vmem:[#allocation7 + $0x14] sm:$0xf]
    %v116 = vld [vmem:[#allocation7 + $0x18] sm:$0xf]
    %v117 = vld [vmem:[#allocation7 + $0x1c] sm:$0xf]
    %v118 = vld [vmem:[%s4] sm:$0x1]
    %v120 = vperm.slane %v118, 0
    %v130 = vunpack.c.l.b16 %v110
    %v131 = vunpack.c.l.b16 %v111
    %v132 = vunpack.c.l.b16 %v112
    %v133 = vunpack.c.l.b16 %v113
    %v134 = vunpack.c.l.b16 %v114
    %v135 = vunpack.c.l.b16 %v115
    %v136 = vunpack.c.l.b16 %v116
    %v137 = vunpack.c.l.b16 %v117
    %v138 = vpack.c.b16 %v131, %v130
    %v139 = vpack.c.b16 %v133, %v132
    %v140 = vpack.c.b16 %v135, %v134
    %v141 = vpack.c.b16 %v137, %v136
    %vm146 = vcmask 523264
    %v148 = vsel %vm146, %v109, 0
    %150 = vmatpush.bf16.msra.mxu0 0
    %151 = vmatpush.bf16.msra.mxu0 0
    %152 = vmatpush.bf16.msra.mxu0 0
    %153 = vmatpush.bf16.msra.mxu0 0
    %154 = vmatpush.bf16.msra.mxu0 %v141
    %155 = vmatpush.bf16.msra.mxu0 %v140
    %156 = vmatpush.bf16.msra.mxu0 %v139
    %157 = vmatpush.bf16.msra.mxu0 %v138
    %158 = vmatmul.bf16.gmra.mxu0 %v148
    %v159 = vpop.f32.mrf.mxu0
    %v160 = vadd.f32 %v120, %v159
    %v161 = vpop.f32.mrf.mxu0
    %162 = vdwg.mxu0
    %163 = vst [vmem:[#allocation8] sm:$0xff] %v160
    // Predicated region
    $region34: #{tpu_custom_call.1} parent=1 // pred_check
      _
    $region35: #{tpu_custom_call.1} parent=1 // pred_check_branch
      %165 = sbr.rel (0) target = $region37
    $region36: #{tpu_custom_call.1} parent=1 // pred_region
      %167 = vsyncadd [#allocation4], 0
      %s169 = sshll.u32 [#allocation8], 4
      %s170 = int_to_ptr.vmem [resolvable:$true] %s169
      %s171 = sshll.u32 %s5, 4
      %s172 = int_to_ptr.hbm [resolvable:$true] %s171
      %174 = dma.vmem_to_hbm [thread:$0]  %s170, 128, %s172, [#allocation4]
    $region37: #{tpu_custom_call.1} parent=1 // pred_fallthru
      _
    // Predicated region
    $region38: #{tpu_custom_call.1} parent=1 // pred_check
      _
    $region39: #{tpu_custom_call.1} parent=1 // pred_check_branch
      %176 = sbr.rel (0) target = $region41
    $region40: #{tpu_custom_call.1} parent=1 // pred_region
      %178 = dma.done [#allocation4], 128
    $region41: #{tpu_custom_call.1} parent=1 // pred_fallthru
      _
    %179 = vsyncpa [#allocation3], 1
    %180 = vsyncpa [#allocation6], 1
    %181 = vsyncpa [#allocation4], 1

</llo_original>
